<compile_context>
chip_gen: v5e
topology: v5e:2x2
jax: 0.10.0
libtpu: 0.0.40
codegen_flags: <defaults>
</compile_context>

<pallas_src>
import jax
import jax.numpy as jnp
from jax.experimental import pallas as pl
from jax.experimental.pallas import tpu as pltpu


def _round_up(x: int, m: int) -> int:
    return (x + m - 1) // m * m


def _linear_logsoftmax_kernel(x_ref, w_ref, b_ref, o_ref, m_ref, l_ref):
    # x_ref: (tm, K)   w_ref: (K, tn)   b_ref: (1, tn)
    # o_ref: (tm, V_pad)  -- resident across the vocab grid axis
    # m_ref / l_ref: (tm, 1) f32 online-logsumexp state
    n = pl.program_id(1)
    n_last = pl.num_programs(1) - 1

    @pl.when(n == 0)
    def _init():
        m_ref[...] = jnp.full_like(m_ref, -jnp.inf)
        l_ref[...] = jnp.zeros_like(l_ref)

    logits = jnp.dot(x_ref[...], w_ref[...], preferred_element_type=jnp.float32)
    logits = logits + b_ref[...].astype(jnp.float32)

    # Online logsumexp update.
    m_prev = m_ref[...]
    m_new = jnp.maximum(m_prev, jnp.max(logits, axis=-1, keepdims=True))
    alpha = jnp.exp(m_prev - m_new)
    l_ref[...] = alpha * l_ref[...] + jnp.sum(
        jnp.exp(logits - m_new), axis=-1, keepdims=True
    )
    m_ref[...] = m_new

    # Stash raw logits for this vocab tile into the resident output block.
    tn = logits.shape[-1]
    col0 = pl.multiple_of(n * tn, 128)
    o_ref[:, pl.ds(col0, tn)] = logits.astype(o_ref.dtype)

    # Finalize: subtract lse = m + log(l) from the whole row block.
    @pl.when(n == n_last)
    def _finalize():
        lse = m_ref[...] + jnp.log(l_ref[...])
        o_ref[...] = (o_ref[...].astype(jnp.float32) - lse).astype(o_ref.dtype)


def linear_decoder_forward(hidden, weight_t, bias, *, tm=256, tn=2048):
    """hidden: (..., input_dim); weight_t: (input_dim, output_dim); bias: (output_dim,)."""
    orig_shape = hidden.shape
    input_dim = orig_shape[-1]
    output_dim = weight_t.shape[1]
    out_dtype = hidden.dtype

    x2d = hidden.reshape(-1, input_dim)          # keep native dtype (bf16/f32)
    n_rows = x2d.shape[0]

    # Row tile: default 256 for MXU occupancy; shrink (multiple of 8) for tiny inputs.
    tm = max(8, min(tm, _round_up(n_rows, 8)))
    n_padded = _round_up(n_rows, tm)
    if n_padded != n_rows:
        x2d = jnp.pad(x2d, ((0, n_padded - n_rows), (0, 0)))

    # Vocab tile: lane-dense multiple of 128; pad vocab so tn divides it.
    tn = max(128, min(tn, _round_up(output_dim, 128)))
    v_pad = _round_up(output_dim, tn)
    w = weight_t
    b2d = bias.reshape(1, output_dim)
    if v_pad != output_dim:
        # Pad vocab columns with zero weights and a huge-negative bias so they
        # contribute nothing to the logsumexp (self-correcting online update).
        w = jnp.pad(w, ((0, 0), (0, v_pad - output_dim)))
        b2d = jnp.pad(
            b2d, ((0, 0), (0, v_pad - output_dim)),
            constant_values=jnp.asarray(-1e30, dtype=bias.dtype),
        )

    grid = (n_padded // tm, v_pad // tn)

    out = pl.pallas_call(
        _linear_logsoftmax_kernel,
        out_shape=jax.ShapeDtypeStruct((n_padded, v_pad), out_dtype),
        grid_spec=pltpu.PrefetchScalarGridSpec(
            num_scalar_prefetch=0,
            grid=grid,
            in_specs=[
                pl.BlockSpec((tm, input_dim), lambda i, n: (i, 0)),
                pl.BlockSpec((input_dim, tn), lambda i, n: (0, n)),
                pl.BlockSpec((1, tn), lambda i, n: (0, n)),
            ],
            out_specs=pl.BlockSpec((tm, v_pad), lambda i, n: (i, 0)),
            scratch_shapes=[
                pltpu.VMEM((tm, 1), jnp.float32),   # running max m
                pltpu.VMEM((tm, 1), jnp.float32),   # running sum l
            ],
        ),
        compiler_params=pltpu.CompilerParams(
            dimension_semantics=("parallel", "arbitrary"),
            vmem_limit_bytes=64 * 1024 * 1024,
        ),
    )(x2d, w, b2d)

    out = out[:n_rows, :output_dim]
    return out.reshape(*orig_shape[:-1], output_dim)


def init_linear_decoder_params(key, input_dim, output_dim):
    """Deterministic init matching nn.Linear's U(-1/sqrt(in), 1/sqrt(in))."""
    kw, kb = jax.random.split(key)
    bound = 1.0 / jnp.sqrt(jnp.float32(input_dim))
    # PyTorch stores weight as (output_dim, input_dim); we keep the transpose.
    weight_t = jax.random.uniform(
        kw, (input_dim, output_dim), jnp.float32, minval=-bound, maxval=bound
    )
    bias = jax.random.uniform(
        kb, (output_dim,), jnp.float32, minval=-bound, maxval=bound
    )
    return weight_t, bias


if __name__ == "__main__":
    key = jax.random.PRNGKey(0)
    k_x, k_p = jax.random.split(key)

    batch, seq, input_dim, output_dim = 2, 8, 32, 128

    hidden = jax.random.normal(k_x, (batch, seq, input_dim), dtype=jnp.float32)
    weight_t, bias = init_linear_decoder_params(k_p, input_dim, output_dim)

    out = linear_decoder_forward(hidden, weight_t, bias)
    out = jax.block_until_ready(out)

    # Reference check in plain JAX.
    logits_ref = hidden @ weight_t + bias
    ref = jax.nn.log_softmax(logits_ref, axis=-1)
    assert out.shape == (batch, seq, output_dim)
    assert jnp.allclose(out, ref, atol=1e-5, rtol=1e-5)

    print("KERNEL_OK")
</pallas_src>

<mosaic_0001>
module attributes {stable_mosaic.version = 11 : i64} {
  func.func @_linear_logsoftmax_kernel(%arg0: i32, %arg1: i32, %arg2: memref<16x32xf32, #tpu.memory_space<vmem>>, %arg3: memref<32x128xf32, #tpu.memory_space<vmem>>, %arg4: memref<1x128xf32, #tpu.memory_space<vmem>>, %arg5: memref<16x128xf32, #tpu.memory_space<vmem>>, %arg6: memref<16x1xf32, #tpu.memory_space<vmem>>, %arg7: memref<16x1xf32, #tpu.memory_space<vmem>>) attributes {dimension_semantics = [#tpu.dimension_semantics<parallel>, #tpu.dimension_semantics<arbitrary>], iteration_bounds = array<i64: 1, 1>, scalar_prefetch = 0 : i64, scratch_operands = 2 : i64, tpu.core_type = #tpu.core_type<tc>, window_params = [{transform_indices = @transform_0, window_bounds = array<i64: 16, 32>}, {transform_indices = @transform_1, window_bounds = array<i64: 32, 128>}, {transform_indices = @transform_2, window_bounds = array<i64: 1, 128>}, {transform_indices = @transform_3, window_bounds = array<i64: 16, 128>}]} {
    %c0_i32 = arith.constant 0 : i32
    %0 = arith.cmpi eq, %arg1, %c0_i32 : i32
    %1 = arith.extui %0 : i1 to i32
    %c0_i32_0 = arith.constant 0 : i32
    %2 = arith.cmpi ne, %1, %c0_i32_0 : i32
    scf.if %2 {
      %cst_19 = arith.constant 0xFF800000 : f32
      %32 = vector.broadcast %cst_19 : f32 to vector<16x1xf32>
      %c0_20 = arith.constant 0 : index
      %c0_21 = arith.constant 0 : index
      %33 = vector.load %arg6[%c0_20, %c0_21] : memref<16x1xf32, #tpu.memory_space<vmem>>, vector<16x1xf32>
      tpu.vector_store %arg6[%c0_20, %c0_21], %32 {strides = array<i32>} : memref<16x1xf32, #tpu.memory_space<vmem>>, vector<16x1xf32>,
      %cst_22 = arith.constant 0.000000e+00 : f32
      %34 = vector.broadcast %cst_22 : f32 to vector<16x1xf32>
      %c0_23 = arith.constant 0 : index
      %c0_24 = arith.constant 0 : index
      %35 = vector.load %arg7[%c0_23, %c0_24] : memref<16x1xf32, #tpu.memory_space<vmem>>, vector<16x1xf32>
      tpu.vector_store %arg7[%c0_23, %c0_24], %34 {strides = array<i32>} : memref<16x1xf32, #tpu.memory_space<vmem>>, vector<16x1xf32>,
    } else {
    }
    %c0 = arith.constant 0 : index
    %c0_1 = arith.constant 0 : index
    %3 = vector.load %arg2[%c0, %c0_1] : memref<16x32xf32, #tpu.memory_space<vmem>>, vector<16x32xf32>
    %c0_2 = arith.constant 0 : index
    %c0_3 = arith.constant 0 : index
    %4 = vector.load %arg3[%c0_2, %c0_3] : memref<32x128xf32, #tpu.memory_space<vmem>>, vector<32x128xf32>
    %cst = arith.constant dense<0.000000e+00> : vector<16x128xf32>
    %5 = tpu.matmul %3, %4, %cst {dimension_numbers = #tpu.dot_dimension_numbers<[1], [0], [0], [1], [0, 0, 1, 1], [], []>} : vector<16x32xf32>, vector<32x128xf32>, vector<16x128xf32> -> vector<16x128xf32>
    %c0_4 = arith.constant 0 : index
    %c0_5 = arith.constant 0 : index
    %6 = vector.load %arg4[%c0_4, %c0_5] : memref<1x128xf32, #tpu.memory_space<vmem>>, vector<1x128xf32>
    %7 = vector.broadcast %6 : vector<1x128xf32> to vector<16x128xf32>
    %8 = arith.addf %5, %7 : vector<16x128xf32>
    %c0_6 = arith.constant 0 : index
    %c0_7 = arith.constant 0 : index
    %9 = vector.load %arg6[%c0_6, %c0_7] : memref<16x1xf32, #tpu.memory_space<vmem>>, vector<16x1xf32>
    %cst_8 = arith.constant dense<0xFF800000> : vector<16xf32>
    %10 = vector.multi_reduction <maximumf>, %8, %cst_8 [1] : vector<16x128xf32> to vector<16xf32>
    %11 = vector.shape_cast %10 : vector<16xf32> to vector<16x1xf32>
    %12 = arith.maximumf %9, %11 : vector<16x1xf32>
    %13 = arith.subf %9, %12 : vector<16x1xf32>
    %14 = math.exp %13 : vector<16x1xf32>
    %c0_9 = arith.constant 0 : index
    %c0_10 = arith.constant 0 : index
    %15 = vector.load %arg7[%c0_9, %c0_10] : memref<16x1xf32, #tpu.memory_space<vmem>>, vector<16x1xf32>
    %16 = arith.mulf %14, %15 : vector<16x1xf32>
    %17 = vector.broadcast %12 : vector<16x1xf32> to vector<16x128xf32>
    %18 = arith.subf %8, %17 : vector<16x128xf32>
    %19 = math.exp %18 : vector<16x128xf32>
    %cst_11 = arith.constant dense<0.000000e+00> : vector<16xf32>
    %20 = vector.multi_reduction <add>, %19, %cst_11 [1] : vector<16x128xf32> to vector<16xf32>
    %21 = vector.shape_cast %20 : vector<16xf32> to vector<16x1xf32>
    %22 = arith.addf %16, %21 : vector<16x1xf32>
    %c0_12 = arith.constant 0 : index
    %c0_13 = arith.constant 0 : index
    %23 = vector.load %arg7[%c0_12, %c0_13] : memref<16x1xf32, #tpu.memory_space<vmem>>, vector<16x1xf32>
    tpu.vector_store %arg7[%c0_12, %c0_13], %22 {strides = array<i32>} : memref<16x1xf32, #tpu.memory_space<vmem>>, vector<16x1xf32>,
    %c0_14 = arith.constant 0 : index
    %c0_15 = arith.constant 0 : index
    %24 = vector.load %arg6[%c0_14, %c0_15] : memref<16x1xf32, #tpu.memory_space<vmem>>, vector<16x1xf32>
    tpu.vector_store %arg6[%c0_14, %c0_15], %12 {strides = array<i32>} : memref<16x1xf32, #tpu.memory_space<vmem>>, vector<16x1xf32>,
    %c128_i32 = arith.constant 128 : i32
    %25 = arith.muli %arg1, %c128_i32 : i32
    %26 = tpu.assume_multiple %25, 128 : i32
    %c0_16 = arith.constant 0 : index
    %27 = arith.index_cast %26 : i32 to index
    %28 = vector.load %arg5[%c0_16, %27] : memref<16x128xf32, #tpu.memory_space<vmem>>, vector<16x128xf32>
    tpu.vector_store %arg5[%c0_16, %27], %8 {strides = array<i32>} : memref<16x128xf32, #tpu.memory_space<vmem>>, vector<16x128xf32>,
    %c0_i32_17 = arith.constant 0 : i32
    %29 = arith.cmpi eq, %arg1, %c0_i32_17 : i32
    %30 = arith.extui %29 : i1 to i32
    %c0_i32_18 = arith.constant 0 : i32
    %31 = arith.cmpi ne, %30, %c0_i32_18 : i32
    scf.if %31 {
      %c0_19 = arith.constant 0 : index
      %c0_20 = arith.constant 0 : index
      %32 = vector.load %arg6[%c0_19, %c0_20] : memref<16x1xf32, #tpu.memory_space<vmem>>, vector<16x1xf32>
      %c0_21 = arith.constant 0 : index
      %c0_22 = arith.constant 0 : index
      %33 = vector.load %arg7[%c0_21, %c0_22] : memref<16x1xf32, #tpu.memory_space<vmem>>, vector<16x1xf32>
      %34 = math.log %33 : vector<16x1xf32>
      %35 = arith.addf %32, %34 : vector<16x1xf32>
      %c0_23 = arith.constant 0 : index
      %c0_24 = arith.constant 0 : index
      %36 = vector.load %arg5[%c0_23, %c0_24] : memref<16x128xf32, #tpu.memory_space<vmem>>, vector<16x128xf32>
      %37 = vector.broadcast %35 : vector<16x1xf32> to vector<16x128xf32>
      %38 = arith.subf %36, %37 : vector<16x128xf32>
      %c0_25 = arith.constant 0 : index
      %c0_26 = arith.constant 0 : index
      %39 = vector.load %arg5[%c0_25, %c0_26] : memref<16x128xf32, #tpu.memory_space<vmem>>, vector<16x128xf32>
      tpu.vector_store %arg5[%c0_25, %c0_26], %38 {strides = array<i32>} : memref<16x128xf32, #tpu.memory_space<vmem>>, vector<16x128xf32>,
    } else {
    }
    return
  }
  func.func @transform_0(%arg0: i32, %arg1: i32) -> (i32, i32) {
    %c0_i32 = arith.constant 0 : i32
    %c0_i32_0 = arith.constant 0 : i32
    return %arg0, %c0_i32 : i32, i32
  }
  func.func @transform_1(%arg0: i32, %arg1: i32) -> (i32, i32) {
    %c0_i32 = arith.constant 0 : i32
    %c0_i32_0 = arith.constant 0 : i32
    return %c0_i32, %arg1 : i32, i32
  }
  func.func @transform_2(%arg0: i32, %arg1: i32) -> (i32, i32) {
    %c0_i32 = arith.constant 0 : i32
    %c0_i32_0 = arith.constant 0 : i32
    return %c0_i32, %arg1 : i32, i32
  }
  func.func @transform_3(%arg0: i32, %arg1: i32) -> (i32, i32) {
    %c0_i32 = arith.constant 0 : i32
    %c0_i32_0 = arith.constant 0 : i32
    return %arg0, %c0_i32 : i32, i32
  }
}

</mosaic_0001>

<llo_original>
// kernel: tpu_custom_call.1
$region0: #{tpu_custom_call.1}
  #allocation0 [shape = 'u32[]', space=smem, size = 0x4, offset = 0x4, fixed_abs, tag = 'smem constant byte address 0x4 - core index']
  #allocation1 [shape = 'u32[72,128]{1,0:T(1,128)}', space=vmem, size = 0x9000, scoped, tag = 'internal scratch']
  #allocation2 [shape = 'f32[16,1]{1,0:T(8,128)}', space=vmem, size = 0x2000, scoped, tag = 'scratch operand']
  #allocation3 [shape = 'f32[16,1]{1,0:T(8,128)}', space=vmem, size = 0x2000, scoped, tag = 'scratch operand']
  %s0 = inlined_call_operand.hbm [shape: f32[16,32], index: 0, kind: input, shape index: {}]
  %s1 = inlined_call_operand.hbm [shape: f32[32,128], index: 1, kind: input, shape index: {}]
  %s2 = inlined_call_operand.vmem [shape: f32[1,128], index: 2, kind: input, shape index: {}]
  %s3 = inlined_call_operand.hbm [shape: f32[16,128], index: 3, kind: output, shape index: {}]
  %s4 = sld [smem:[#allocation0]]
  $region38: #{tpu_custom_call.1} parent=0
    _
  %s6 = ssub.s32 1, %s4
  %s7 = scalar_select 0, %s6, %s4
  $region1: #{tpu_custom_call.1} parent=0
    #allocation4 [shape = 'u8[8192]{0}', space=vmem, size = 0x2000, scoped, tag = 'input window, operand 0, single buffered']
    #allocation5 [shape = 's32[1]{0}', space=sflag, size = 0x4, scoped, tag = 'scoped memory for tpu_custom_call.1']
    #allocation6 [shape = 's32[1]{0}', space=sflag, size = 0x4, scoped, tag = 'scoped memory for tpu_custom_call.1']
    #allocation7 [shape = 'u8[16384]{0}', space=vmem, size = 0x4000, scoped, tag = 'input window, operand 1, single buffered']
    #allocation8 [shape = 's32[1]{0}', space=sflag, size = 0x4, scoped, tag = 'scoped memory for tpu_custom_call.1']
    #allocation9 [shape = 'u8[8192]{0}', space=vmem, size = 0x2000, scoped, tag = 'output window, operand 0, single buffered']
    %8 = vsyncpa [#allocation5], 0
    %9 = vsyncpa [#allocation8], 0
    %10 = vsyncpa [#allocation6], 0
    // Predicated region
    $region2: #{tpu_custom_call.1} parent=1 // pred_check
      _
    $region3: #{tpu_custom_call.1} parent=1 // pred_check_branch
      %12 = sbr.rel (0) target = $region5
    $region4: #{tpu_custom_call.1} parent=1 // pred_region
      %14 = vsyncadd [#allocation5], 0
      %s15 = sshll.u32 %s0, 4
      %s16 = int_to_ptr.hbm [resolvable:$true] %s15
      %s17 = sshll.u32 [#allocation4], 4
      %s18 = int_to_ptr.vmem [resolvable:$true] %s17
      %23 = dma.hbm_to_vmem [thread:$0]  %s16, 256, %s18, [#allocation5], 128, 128, 8
    $region5: #{tpu_custom_call.1} parent=1 // pred_fallthru
      _
    // Predicated region
    $region6: #{tpu_custom_call.1} parent=1 // pred_check
      _
    $region7: #{tpu_custom_call.1} parent=1 // pred_check_branch
      %25 = sbr.rel (0) target = $region9
    $region8: #{tpu_custom_call.1} parent=1 // pred_region
      %27 = vsyncadd [#allocation8], 0
      %s28 = sshll.u32 %s1, 4
      %s29 = int_to_ptr.hbm [resolvable:$true] %s28
      %s30 = sshll.u32 [#allocation7], 4
      %s31 = int_to_ptr.vmem [resolvable:$true] %s30
      %36 = dma.hbm_to_vmem [thread:$0]  %s29, 512, %s31, [#allocation8], 128, 128, 8
    $region9: #{tpu_custom_call.1} parent=1 // pred_fallthru
      _
    // Predicated region
    $region10: #{tpu_custom_call.1} parent=1 // pred_check
      _
    $region11: #{tpu_custom_call.1} parent=1 // pred_check_branch
      %38 = sbr.rel (0) target = $region13
    $region12: #{tpu_custom_call.1} parent=1 // pred_region
      _
    $region13: #{tpu_custom_call.1} parent=1 // pred_fallthru
      _
    // Predicated region
    $region14: #{tpu_custom_call.1} parent=1 // pred_check
      _
    $region15: #{tpu_custom_call.1} parent=1 // pred_check_branch
      %40 = sbr.rel (0) target = $region17
    $region16: #{tpu_custom_call.1} parent=1 // pred_region
      %42 = dma.done [#allocation5], 256
    $region17: #{tpu_custom_call.1} parent=1 // pred_fallthru
      _
    // Predicated region
    $region18: #{tpu_custom_call.1} parent=1 // pred_check
      _
    $region19: #{tpu_custom_call.1} parent=1 // pred_check_branch
      %44 = sbr.rel (0) target = $region21
    $region20: #{tpu_custom_call.1} parent=1 // pred_region
      %46 = dma.done [#allocation8], 512
    $region21: #{tpu_custom_call.1} parent=1 // pred_fallthru
      _
    %p47 = scmp.eq.s32.totalorder 0, 0
    // Predicated region
    $region22: #{tpu_custom_call.1} parent=1 // pred_check
      %p48 = pneg %p47
    $region23: #{tpu_custom_call.1} parent=1 // pred_check_branch
      %50 = sbr.rel (%p48) target = $region25
    $region24: #{tpu_custom_call.1} parent=1 // pred_region
      %vm51 = vcmask 7168
      %52 = vst.msk [vmem:[#allocation2] sm:$0xff] %vm51, -inf
      %53 = vst.msk [vmem:[#allocation2 + $0x8] sm:$0xff] %vm51, -inf
      %54 = vst.msk [vmem:[#allocation3] sm:$0xff] %vm51, 0.0
      %55 = vst.msk [vmem:[#allocation3 + $0x8] sm:$0xff] %vm51, 0.0
    $region25: #{tpu_custom_call.1} parent=1 // pred_fallthru
      _
    %v56 = vld [vmem:[#allocation4] sm:$0xff]
    %v57 = vld [vmem:[#allocation4 + $0x8] sm:$0xff]
    %v58 = vld [vmem:[#allocation7] sm:$0xff]
    %v59 = vld [vmem:[#allocation7 + $0x8] sm:$0xff]
    %v60 = vld [vmem:[#allocation7 + $0x10] sm:$0xff]
    %v61 = vld [vmem:[#allocation7 + $0x18] sm:$0xff]
    %v62 = vld [vmem:[%s2] sm:$0x1]
    %v64 = vperm.slane %v62, 0
    %vm66 = vcmask 261120
    %v68 = vsel %vm66, %v56, 0
    %v71 = vsel %vm66, %v57, 0
    %73 = vmatpush.msra.mxu0 0.0
    %74 = vmatpush.msra.mxu0 0.0
    %75 = vmatpush.msra.mxu0 0.0
    %76 = vmatpush.msra.mxu0 0.0
    %77 = vmatpush.msra.mxu0 0.0
    %78 = vmatpush.msra.mxu0 0.0
    %79 = vmatpush.msra.mxu0 0.0
    %80 = vmatpush.msra.mxu0 0.0
    %81 = vmatpush.msra.mxu0 0.0
    %82 = vmatpush.msra.mxu0 0.0
    %83 = vmatpush.msra.mxu0 0.0
    %84 = vmatpush.msra.mxu0 0.0
    %85 = vmatpush.msra.mxu0 %v61
    %86 = vmatpush.msra.mxu0 %v60
    %87 = vmatpush.msra.mxu0 %v59
    %88 = vmatpush.msra.mxu0 %v58
    %89 = vmatmul.f32.gmra.mxu0 %v68
    %v90 = vpop.f32.mrf.mxu0
    %v91 = vadd.f32 %v64, %v90
    %92 = vmatmul.f32.gmra.mxu0 %v71
    %v93 = vpop.f32.mrf.mxu0
    %v94 = vadd.f32 %v64, %v93
    %95 = vdwg.mxu0
    %v96 = vld [vmem:[#allocation2] sm:$0xff]
    %v97 = vld [vmem:[#allocation2 + $0x8] sm:$0xff]
    %98 = vmax.xlane.f32.xlu0 %v91
    %v99 = vpop.xlane.xlu0 %98
    %100 = vmax.xlane.f32.xlu0 %v94
    %v101 = vpop.xlane.xlu0 %100
    %v102 = vmax.f32 %v96, %v99
    %v103 = vmax.f32 %v97, %v101
    %v104 = vsub.f32 %v96, %v102
    %v105 = vsub.f32 %v97, %v103
    %v106 = vmul.f32 %v104, 1.442695
    %v107 = vpow.pop %v106
    %v108 = vmul.f32 %v105, 1.442695
    %v109 = vpow.pop %v108
    %v110 = vld [vmem:[#allocation3] sm:$0xff]
    %v111 = vld [vmem:[#allocation3 + $0x8] sm:$0xff]
    %v112 = vmul.f32 %v107, %v110
    %v113 = vmul.f32 %v109, %v111
    %115 = vset.pattern.permute.xlu0 0
    %116 = vperm.xlu0 %115, %v102
    %v117 = vpop.permute.xlu0 %116
    %120 = vset.pattern.permute.xlu0 0
    %121 = vperm.xlu0 %120, %v103
    %v122 = vpop.permute.xlu0 %121
    %v124 = vsub.f32 %v91, %v117
    %v125 = vsub.f32 %v94, %v122
    %v126 = vmul.f32 %v124, 1.442695
    %v127 = vpow.pop %v126
    %v128 = vmul.f32 %v125, 1.442695
    %v129 = vpow.pop %v128
    %130 = vadd.xlane.f32.xlu0 %v127
    %v131 = vpop.xlane.xlu0 %130
    %132 = vadd.xlane.f32.xlu0 %v129
    %v133 = vpop.xlane.xlu0 %132
    %v134 = vadd.f32 %v112, %v131
    %v135 = vadd.f32 %v113, %v133
    %vm136 = vcmask 7168
    %137 = vst.msk [vmem:[#allocation3] sm:$0xff] %vm136, %v134
    %138 = vst.msk [vmem:[#allocation3 + $0x8] sm:$0xff] %vm136, %v135
    %139 = vst.msk [vmem:[#allocation2] sm:$0xff] %vm136, %v102
    %140 = vst.msk [vmem:[#allocation2 + $0x8] sm:$0xff] %vm136, %v103
    %s141 = smul.u32 0, 128
    %s142 = sshra.s32 %s141, 7
    %s143 = sand.u32 %s141, 127
    %s144 = scalar_lea.vmem [#allocation9], %s142
    %145 = vst [vmem:[%s144] sm:$0xff] %v91
    %146 = vst [vmem:[%s144 + $0x8] sm:$0xff] %v94
    // Predicated region
    $region26: #{tpu_custom_call.1} parent=1 // pred_check
      %p147 = pneg %p47
    $region27: #{tpu_custom_call.1} parent=1 // pred_check_branch
      %149 = sbr.rel (%p147) target = $region29
    $region28: #{tpu_custom_call.1} parent=1 // pred_region
      %v150 = vld [vmem:[#allocation2] sm:$0xff]
      %v151 = vld [vmem:[#allocation2 + $0x8] sm:$0xff]
      %v152 = vld [vmem:[#allocation3] sm:$0xff]
      %v153 = vld [vmem:[#allocation3 + $0x8] sm:$0xff]
      %v154 = vlog2.pop %v152
      %v155 = vmul.f32 %v154, 0.6931472
      %v156 = vlog2.pop %v153
      %v157 = vmul.f32 %v156, 0.6931472
      %v158 = vadd.f32 %v150, %v155
      %v159 = vadd.f32 %v151, %v157
      %v160 = vld [vmem:[#allocation9] sm:$0xff]
      %v161 = vld [vmem:[#allocation9 + $0x8] sm:$0xff]
      %163 = vset.pattern.permute.xlu0 0
      %164 = vperm.xlu0 %163, %v158
      %v165 = vpop.permute.xlu0 %164
      %168 = vset.pattern.permute.xlu0 0
      %169 = vperm.xlu0 %168, %v159
      %v170 = vpop.permute.xlu0 %169
      %v172 = vsub.f32 %v160, %v165
      %v173 = vsub.f32 %v161, %v170
      %174 = vst [vmem:[#allocation9] sm:$0xff] %v172
      %175 = vst [vmem:[#allocation9 + $0x8] sm:$0xff] %v173
    $region29: #{tpu_custom_call.1} parent=1 // pred_fallthru
      _
    // Predicated region
    $region30: #{tpu_custom_call.1} parent=1 // pred_check
      _
    $region31: #{tpu_custom_call.1} parent=1 // pred_check_branch
      %177 = sbr.rel (0) target = $region33
    $region32: #{tpu_custom_call.1} parent=1 // pred_region
      %179 = vsyncadd [#allocation6], 0
      %s180 = sshll.u32 [#allocation9], 4
      %s181 = int_to_ptr.vmem [resolvable:$true] %s180
      %s182 = sshll.u32 %s3, 4
      %s183 = int_to_ptr.hbm [resolvable:$true] %s182
      %188 = dma.vmem_to_hbm [thread:$0]  %s181, 256, %s183, [#allocation6], 128, 128, 8
    $region33: #{tpu_custom_call.1} parent=1 // pred_fallthru
      _
    // Predicated region
    $region34: #{tpu_custom_call.1} parent=1 // pred_check
      _
    $region35: #{tpu_custom_call.1} parent=1 // pred_check_branch
      %190 = sbr.rel (0) target = $region37
    $region36: #{tpu_custom_call.1} parent=1 // pred_region
      %192 = dma.done [#allocation6], 256
    $region37: #{tpu_custom_call.1} parent=1 // pred_fallthru
      _
    %193 = vsyncpa [#allocation5], 1
    %194 = vsyncpa [#allocation8], 1
    %195 = vsyncpa [#allocation6], 1

</llo_original>
